<compile_context>
chip_gen: v6e
topology: v6e:2x2x1
jax: 0.10.0
libtpu: 0.0.40
codegen_flags: <defaults>
</compile_context>

<pallas_src>
import functools

import jax
import jax.numpy as jnp
from jax.experimental import pallas as pl
from jax.experimental.pallas import tpu as pltpu


def _shadow_pcf_kernel(xk_ref, yk_ref, aa_ref, z2w_ref, vis_ref, *,
                       image_size, filter_size, shadow_step):
    """One (batch, pixel-tile) step of the 3x3 PCF shadow-visibility map.

    Refs (all VMEM):
      xk_ref  : (1, TR, L) int32   rounded light-screen x per pixel
      yk_ref  : (1, TR, L) int32   rounded light-screen y per pixel
      aa_ref  : (1, TR, L) f32     light-view depth of the hit point - 0.008
      z2w_ref : (1, 2W, H) bf16    light z-buffer, transposed; sublanes [0:W]
                                   hold the bf16 "hi" plane, [W:2W] the bf16
                                   residual -> one fused matmul gathers both.
      vis_ref : (1, TR, L) f32     output visibility
    """
    tr = xk_ref.shape[1]
    lanes = xk_ref.shape[2]
    w = z2w_ref.shape[1] // 2
    h = z2w_ref.shape[2]
    inv_taps = 1.0 / float((2 * filter_size + 1) ** 2)

    z2w = z2w_ref[0]                       # (2W, H) bf16, VMEM-resident block

    def row_body(s, carry):
        # One lane-row of L pixels (L = 256 fills the 256-wide MXU on
        # v6e/v7x; on v5e it becomes two 128-wide pushes of equal work).
        x_row = xk_ref[0, pl.ds(s, 1), :]          # (1, L) int32
        y_row = yk_ref[0, pl.ds(s, 1), :]          # (1, L) int32
        aa_row = aa_ref[0, pl.ds(s, 1), :]         # (1, L) f32

        vis_row = jnp.zeros((1, lanes), jnp.float32)
        # 3x3 taps stay unrolled: image rows depend only on ii (one fused
        # bf16 matmul each), columns only on jj (lane-aligned select + XLU
        # sublane reduce).
        for ii in range(-filter_size, filter_size + 1):
            r = jnp.clip(y_row + ii * shadow_step, 0, image_size - 1)
            r_onehot = (jax.lax.broadcasted_iota(jnp.int32, (h, lanes), 0)
                        == r).astype(jnp.bfloat16)                     # (H, L)
            zrows2 = jnp.dot(z2w, r_onehot,
                             preferred_element_type=jnp.float32)       # (2W, L)
            zrows = zrows2[:w, :] + zrows2[w:, :]                      # (W, L)
            for jj in range(-filter_size, filter_size + 1):
                c = jnp.clip(x_row + jj * shadow_step, 0, image_size - 1)
                # Rematerialized iota; no (W, L) masks cached across taps.
                w_iota = jax.lax.broadcasted_iota(jnp.int32, (w, lanes), 0)
                depth = jnp.sum(jnp.where(w_iota == c, zrows, 0.0),
                                axis=0, keepdims=True)                 # (1, L)
                # sigmoid(z) == 0.5 * (tanh(z/2) + 1): single EUP op.
                vis_row = vis_row + 0.5 * (
                    jnp.tanh((depth - aa_row) * 500.0) + 1.0)
        vis_ref[0, pl.ds(s, 1), :] = vis_row * inv_taps
        return carry

    # Bounded code size (vs. full unroll); unroll=2 keeps multiple independent
    # row-gather dots in flight for v5e's 4 MXUs.
    jax.lax.fori_loop(0, tr, row_body, 0, unroll=min(2, tr))


def _tile_rows(rows, max_rows):
    """Pixel-tile height in lane rows: full array, or a multiple of 8."""
    if rows <= max_rows:
        return rows
    t = (max_rows // 8) * 8
    while t >= 8:
        if rows % t == 0:
            return t
        t -= 8
    return rows


def shadow_visibility_pallas(pix_to_face_cam, bary_cam, zbuf_light, faces_verts,
                             R_light, T_light, screen_mats, image_size,
                             filter_size=1, shadow_step=1, max_tile_rows=32):
    N, H, W, K = pix_to_face_cam.shape
    assert K == 1, "module semantics require faces_per_pixel == 1"
    P = H * W * K
    assert P % 128 == 0, "H*W*K must be a multiple of the 128-lane width"
    # 256-lane pixel rows fill the 256-wide MXU on v6e/v7x (harmless on v5e).
    lanes = 256 if P % 256 == 0 else 128
    rows = P // lanes
    tr = _tile_rows(rows, max_tile_rows)
    num_tiles = rows // tr

    # ---- XLA-side per-pixel geometry (O(P); 3 input planes instead of 13) --
    p2f = pix_to_face_cam.reshape(N, P)
    valid = p2f >= 0
    g = faces_verts.astype(jnp.float32)[jnp.where(valid, p2f, 0)]   # (N,P,3,3)
    bary = bary_cam.reshape(N, P, 3).astype(jnp.float32)
    pts = (bary[..., 0:1] * g[..., 0, :]
           + bary[..., 1:2] * g[..., 1, :]
           + bary[..., 2:3] * g[..., 2, :])
    pts = jnp.where(valid[..., None], pts, 0.0)                     # (N, P, 3)

    # Light world->view depth (row vectors), bias 0.008.
    view = jnp.einsum('npd,ndc->npc', pts, R_light,
                      precision='highest') + T_light[:, None, :]
    aa = (view[..., 2] - 0.008).astype(jnp.float32)                 # (N, P)

    # transform_points_screen: h = [p, 1] @ M ; screen = h_xy / h_w.
    pts_h = jnp.concatenate([pts, jnp.ones((N, P, 1), jnp.float32)], axis=-1)
    hmg = jnp.einsum('npd,ndc->npc', pts_h, screen_mats, precision='highest')
    # Background pixels masked BEFORE divide / round / int-cast.
    hw = jnp.where(valid, hmg[..., 3], 1.0)
    xk = jnp.round(jnp.where(valid, hmg[..., 0] / hw, 0.0)).astype(jnp.int32)
    yk = jnp.round(jnp.where(valid, hmg[..., 1] / hw, 0.0)).astype(jnp.int32)

    xk = xk.reshape(N, rows, lanes)
    yk = yk.reshape(N, rows, lanes)
    aa = aa.reshape(N, rows, lanes)

    # ---- light z-buffer: transposed, bf16 hi/lo stacked along sublanes -----
    # Both planes (and the in-kernel one-hots) are bf16 so every row-gather
    # dot is a native single-pass MXU matmul; hi+lo recovers ~16 mantissa
    # bits exactly (one-hot gather -> no cancellation inside the dot).
    zt = jnp.transpose(zbuf_light[..., 0].astype(jnp.float32), (0, 2, 1))
    z_hi = zt.astype(jnp.bfloat16)
    z_lo = (zt - z_hi.astype(jnp.float32)).astype(jnp.bfloat16)
    z2w = jnp.concatenate([z_hi, z_lo], axis=1)                 # (N, 2W, H) bf16

    kernel = functools.partial(
        _shadow_pcf_kernel, image_size=int(image_size),
        filter_size=int(filter_size), shadow_step=int(shadow_step))

    grid_spec = pltpu.PrefetchScalarGridSpec(
        num_scalar_prefetch=0,
        grid=(N, num_tiles),
        in_specs=[
            pl.BlockSpec((1, tr, lanes), lambda b, t: (b, t, 0)),   # x key
            pl.BlockSpec((1, tr, lanes), lambda b, t: (b, t, 0)),   # y key
            pl.BlockSpec((1, tr, lanes), lambda b, t: (b, t, 0)),   # aa
            pl.BlockSpec((1, 2 * W, H), lambda b, t: (b, 0, 0)),    # zbuf^T hi|lo
        ],
        out_specs=pl.BlockSpec((1, tr, lanes), lambda b, t: (b, t, 0)),
    )

    # VMEM budget from actual block sizes (bf16 zbuf) + in-kernel temporaries,
    # capped per-generation from the hardware query (fits v7x's 64 MiB/TC).
    try:
        vmem_cap = int(getattr(pltpu.get_tpu_info(), "vmem_capacity_bytes",
                               64 << 20))
    except Exception:
        vmem_cap = 64 << 20
    blk_bytes = (3 * 4 + 4) * tr * lanes + 2 * W * H * 2
    tmp_bytes = H * lanes * 2 + 3 * W * lanes * 4
    vmem_bytes = 2 * blk_bytes + tmp_bytes + (4 << 20)
    vmem_bytes = int(min(max(vmem_bytes, 16 << 20), (vmem_cap * 3) // 4))

    vis = pl.pallas_call(
        kernel,
        out_shape=jax.ShapeDtypeStruct((N, rows, lanes), jnp.float32),
        grid_spec=grid_spec,
        compiler_params=pltpu.CompilerParams(
            dimension_semantics=("parallel", "parallel"),
            vmem_limit_bytes=vmem_bytes),
    )(xk, yk, aa, z2w)
    return vis.reshape(N, H, W, K)


def shadow_visibility_reference(pix_to_face_cam, bary_cam, zbuf_light,
                                faces_verts, R_light, T_light, screen_mats,
                                image_size, filter_size=1, shadow_step=1):
    """Pure-JAX mirror of the PyTorch forward's visibility computation."""
    N, H, W, K = pix_to_face_cam.shape
    P = H * W * K
    valid = pix_to_face_cam >= 0
    idx = jnp.where(valid, pix_to_face_cam, 0)
    gathered = faces_verts[idx]                                   # (N,H,W,K,3,3)
    pix3d = (bary_cam[..., 0:1] * gathered[..., 0, :]
             + bary_cam[..., 1:2] * gathered[..., 1, :]
             + bary_cam[..., 2:3] * gathered[..., 2, :])
    pix3d = jnp.where(valid[..., None], pix3d, 0.0)
    pts = pix3d.reshape(N, P, 3)
    view = jnp.einsum('npd,ndc->npc', pts, R_light,
                      precision='highest') + T_light[:, None, :]
    aa = view[..., 2].reshape(N, H, W, K) - 0.008
    pts_h = jnp.concatenate([pts, jnp.ones((N, P, 1), jnp.float32)], axis=-1)
    h = jnp.einsum('npd,ndc->npc', pts_h, screen_mats, precision='highest')
    validf = valid.reshape(N, P)
    hw = jnp.where(validf, h[..., 3], 1.0)
    sx = jnp.where(validf, h[..., 0] / hw, 0.0)
    sy = jnp.where(validf, h[..., 1] / hw, 0.0)
    xk = jnp.round(sx).astype(jnp.int32).reshape(N, H, W, K)
    yk = jnp.round(sy).astype(jnp.int32).reshape(N, H, W, K)
    zb = zbuf_light[..., 0]                                       # (N, H, W)
    bidx = jnp.arange(N)[:, None, None, None]
    vis = jnp.zeros((N, H, W, K), jnp.float32)
    for ii in range(-filter_size, filter_size + 1):
        for jj in range(-filter_size, filter_size + 1):
            row = jnp.clip(yk + ii * shadow_step, 0, image_size - 1)
            col = jnp.clip(xk + jj * shadow_step, 0, image_size - 1)
            depth = zb[bidx, row, col]
            vis = vis + jax.nn.sigmoid((depth - aa) * 1000.0)
    return vis / float((2 * filter_size + 1) ** 2)


def _rot_y(a):
    c, s = jnp.cos(a), jnp.sin(a)
    return jnp.array([[c, 0.0, s], [0.0, 1.0, 0.0], [-s, 0.0, c]], jnp.float32)


if __name__ == "__main__":
    key = jax.random.PRNGKey(0)
    k1, k2, k3, k4, k5 = jax.random.split(key, 5)

    # Small synthetic scene / rasterizer fragments.
    N, H, W, K = 2, 16, 16, 1       # batch, image (square), faces_per_pixel
    F, V = 8, 12                    # faces, packed vertices
    IMG = H                         # kwargs['image_size'][0][0]

    verts = jax.random.uniform(k1, (V, 3), minval=-1.0, maxval=1.0)
    faces = jax.random.randint(k2, (F, 3), 0, V)
    faces_verts = verts[faces]                                     # (F, 3, 3)

    pix_to_face_cam = jax.random.randint(k3, (N, H, W, K), -1, F)  # -1 = bg
    u = jax.random.uniform(k4, (N, H, W, K, 3), minval=1e-3, maxval=1.0)
    bary_cam = u / jnp.sum(u, axis=-1, keepdims=True)
    zbuf_light = 5.0 + 0.5 * jax.random.uniform(
        k5, (N, H, W, K), minval=-1.0, maxval=1.0)

    # Deterministic synthetic light camera (world->view R|T and a row-vector
    # pinhole world->screen-homogeneous 4x4, w = z_view).
    R_light = jnp.stack([_rot_y(0.10), _rot_y(-0.15)]).astype(jnp.float32)
    T_light = jnp.array([[0.10, -0.05, 5.0], [-0.10, 0.08, 5.0]], jnp.float32)
    fx = fy = 0.4 * IMG
    cx = cy = (IMG - 1) / 2.0
    P_proj = jnp.array([[fx, 0.0, 0.0, 0.0],
                        [0.0, fy, 0.0, 0.0],
                        [cx, cy, 1.0, 1.0],
                        [0.0, 0.0, 0.0, 0.0]], jnp.float32)
    Vmat = (jnp.zeros((N, 4, 4), jnp.float32)
            .at[:, :3, :3].set(R_light)
            .at[:, 3, :3].set(T_light)
            .at[:, 3, 3].set(1.0))
    screen_mats = jnp.einsum('nij,jk->nik', Vmat, P_proj, precision='highest')

    vis_kernel = shadow_visibility_pallas(
        pix_to_face_cam, bary_cam, zbuf_light, faces_verts,
        R_light, T_light, screen_mats, IMG)
    vis_kernel = jax.block_until_ready(vis_kernel)

    vis_ref = shadow_visibility_reference(
        pix_to_face_cam, bary_cam, zbuf_light, faces_verts,
        R_light, T_light, screen_mats, IMG)

    diff = jnp.abs(vis_kernel - vis_ref)
    frac_ok = float(jnp.mean((diff < 1e-2).astype(jnp.float32)))
    assert vis_kernel.shape == (N, H, W, K)
    # bf16 hi/lo depth split leaves ~1e-4 absolute depth error; only taps
    # sitting exactly on the steep sigmoid transition can differ noticeably.
    assert frac_ok > 0.98, f"visibility mismatch: frac_ok={frac_ok}"
    print("KERNEL_OK")
</pallas_src>

<mosaic_0001>
module attributes {stable_mosaic.version = 11 : i64} {
  func.func @_shadow_pcf_kernel(%arg0: i32, %arg1: i32, %arg2: memref<1x1x256xi32, #tpu.memory_space<vmem>>, %arg3: memref<1x1x256xi32, #tpu.memory_space<vmem>>, %arg4: memref<1x1x256xf32, #tpu.memory_space<vmem>>, %arg5: memref<1x32x16xbf16, #tpu.memory_space<vmem>>, %arg6: memref<1x1x256xf32, #tpu.memory_space<vmem>>) attributes {dimension_semantics = [#tpu.dimension_semantics<parallel>, #tpu.dimension_semantics<parallel>], iteration_bounds = array<i64: 2, 1>, scalar_prefetch = 0 : i64, scratch_operands = 0 : i64, tpu.core_type = #tpu.core_type<tc>, window_params = [{transform_indices = @transform_0, window_bounds = array<i64: 1, 1, 256>}, {transform_indices = @transform_1, window_bounds = array<i64: 1, 1, 256>}, {transform_indices = @transform_2, window_bounds = array<i64: 1, 1, 256>}, {transform_indices = @transform_3, window_bounds = array<i64: 1, 32, 16>}, {transform_indices = @transform_4, window_bounds = array<i64: 1, 1, 256>}]} {
    %c0 = arith.constant 0 : index
    %c0_0 = arith.constant 0 : index
    %c0_1 = arith.constant 0 : index
    %0 = vector.load %arg5[%c0, %c0_0, %c0_1] : memref<1x32x16xbf16, #tpu.memory_space<vmem>>, vector<1x32x16xbf16>
    %1 = vector.shape_cast %0 : vector<1x32x16xbf16> to vector<32x16xbf16>
    %c0_i32 = arith.constant 0 : i32
    %c0_2 = arith.constant 0 : index
    %2 = arith.index_cast %c0_i32 : i32 to index
    %c0_3 = arith.constant 0 : index
    %3 = vector.load %arg2[%c0_2, %2, %c0_3] : memref<1x1x256xi32, #tpu.memory_space<vmem>>, vector<1x1x256xi32>
    %4 = vector.shape_cast %3 : vector<1x1x256xi32> to vector<1x256xi32>
    %c0_4 = arith.constant 0 : index
    %5 = arith.index_cast %c0_i32 : i32 to index
    %c0_5 = arith.constant 0 : index
    %6 = vector.load %arg3[%c0_4, %5, %c0_5] : memref<1x1x256xi32, #tpu.memory_space<vmem>>, vector<1x1x256xi32>
    %7 = vector.shape_cast %6 : vector<1x1x256xi32> to vector<1x256xi32>
    %c0_6 = arith.constant 0 : index
    %8 = arith.index_cast %c0_i32 : i32 to index
    %c0_7 = arith.constant 0 : index
    %9 = vector.load %arg4[%c0_6, %8, %c0_7] : memref<1x1x256xf32, #tpu.memory_space<vmem>>, vector<1x1x256xf32>
    %10 = vector.shape_cast %9 : vector<1x1x256xf32> to vector<1x256xf32>
    %cst = arith.constant 0.000000e+00 : f32
    %11 = vector.broadcast %cst : f32 to vector<1x256xf32>
    %c-1_i32 = arith.constant -1 : i32
    %12 = vector.broadcast %c-1_i32 : i32 to vector<1x256xi32>
    %13 = arith.addi %7, %12 : vector<1x256xi32>
    %c0_i32_8 = arith.constant 0 : i32
    %c15_i32 = arith.constant 15 : i32
    %14 = vector.broadcast %c0_i32_8 : i32 to vector<1x256xi32>
    %15 = arith.maxsi %14, %13 : vector<1x256xi32>
    %16 = vector.broadcast %c15_i32 : i32 to vector<1x256xi32>
    %17 = arith.minsi %16, %15 : vector<1x256xi32>
    %18 = tpu.iota {dimensions = array<i32: 0>} : vector<16x256xi32>
    %19 = vector.broadcast %17 : vector<1x256xi32> to vector<16x256xi32>
    %20 = arith.cmpi eq, %18, %19 : vector<16x256xi32>
    %21 = arith.extui %20 : vector<16x256xi1> to vector<16x256xi32>
    %22 = arith.sitofp %21 : vector<16x256xi32> to vector<16x256xf32>
    %23 = arith.truncf %22 : vector<16x256xf32> to vector<16x256xbf16>
    %cst_9 = arith.constant dense<0.000000e+00> : vector<32x256xf32>
    %24 = tpu.matmul %1, %23, %cst_9 {dimension_numbers = #tpu.dot_dimension_numbers<[1], [0], [0], [1], [0, 0, 1, 1], [], []>} : vector<32x16xbf16>, vector<16x256xbf16>, vector<32x256xf32> -> vector<32x256xf32>
    %25 = vector.extract_strided_slice %24 {offsets = [0, 0], sizes = [16, 256], strides = [1, 1]} : vector<32x256xf32> to vector<16x256xf32>
    %26 = vector.extract_strided_slice %24 {offsets = [16, 0], sizes = [16, 256], strides = [1, 1]} : vector<32x256xf32> to vector<16x256xf32>
    %27 = arith.addf %25, %26 : vector<16x256xf32>
    %c-1_i32_10 = arith.constant -1 : i32
    %28 = vector.broadcast %c-1_i32_10 : i32 to vector<1x256xi32>
    %29 = arith.addi %4, %28 : vector<1x256xi32>
    %c0_i32_11 = arith.constant 0 : i32
    %c15_i32_12 = arith.constant 15 : i32
    %30 = vector.broadcast %c0_i32_11 : i32 to vector<1x256xi32>
    %31 = arith.maxsi %30, %29 : vector<1x256xi32>
    %32 = vector.broadcast %c15_i32_12 : i32 to vector<1x256xi32>
    %33 = arith.minsi %32, %31 : vector<1x256xi32>
    %34 = tpu.iota {dimensions = array<i32: 0>} : vector<16x256xi32>
    %35 = vector.broadcast %33 : vector<1x256xi32> to vector<16x256xi32>
    %36 = arith.cmpi eq, %34, %35 : vector<16x256xi32>
    %cst_13 = arith.constant 0.000000e+00 : f32
    %37 = vector.broadcast %cst_13 : f32 to vector<16x256xf32>
    %38 = arith.select %36, %27, %37 : vector<16x256xi1>, vector<16x256xf32>
    %cst_14 = arith.constant dense<0.000000e+00> : vector<256xf32>
    %39 = vector.multi_reduction <add>, %38, %cst_14 [0] : vector<16x256xf32> to vector<256xf32>
    %40 = vector.shape_cast %39 : vector<256xf32> to vector<1x256xf32>
    %41 = arith.subf %40, %10 : vector<1x256xf32>
    %cst_15 = arith.constant 5.000000e+02 : f32
    %42 = vector.broadcast %cst_15 : f32 to vector<1x256xf32>
    %43 = arith.mulf %41, %42 : vector<1x256xf32>
    %44 = math.tanh %43 : vector<1x256xf32>
    %cst_16 = arith.constant 1.000000e+00 : f32
    %45 = vector.broadcast %cst_16 : f32 to vector<1x256xf32>
    %46 = arith.addf %44, %45 : vector<1x256xf32>
    %cst_17 = arith.constant 5.000000e-01 : f32
    %47 = vector.broadcast %cst_17 : f32 to vector<1x256xf32>
    %48 = arith.mulf %47, %46 : vector<1x256xf32>
    %49 = arith.addf %11, %48 : vector<1x256xf32>
    %c0_i32_18 = arith.constant 0 : i32
    %50 = vector.broadcast %c0_i32_18 : i32 to vector<1x256xi32>
    %51 = arith.addi %4, %50 : vector<1x256xi32>
    %c0_i32_19 = arith.constant 0 : i32
    %c15_i32_20 = arith.constant 15 : i32
    %52 = vector.broadcast %c0_i32_19 : i32 to vector<1x256xi32>
    %53 = arith.maxsi %52, %51 : vector<1x256xi32>
    %54 = vector.broadcast %c15_i32_20 : i32 to vector<1x256xi32>
    %55 = arith.minsi %54, %53 : vector<1x256xi32>
    %56 = tpu.iota {dimensions = array<i32: 0>} : vector<16x256xi32>
    %57 = vector.broadcast %55 : vector<1x256xi32> to vector<16x256xi32>
    %58 = arith.cmpi eq, %56, %57 : vector<16x256xi32>
    %cst_21 = arith.constant 0.000000e+00 : f32
    %59 = vector.broadcast %cst_21 : f32 to vector<16x256xf32>
    %60 = arith.select %58, %27, %59 : vector<16x256xi1>, vector<16x256xf32>
    %cst_22 = arith.constant dense<0.000000e+00> : vector<256xf32>
    %61 = vector.multi_reduction <add>, %60, %cst_22 [0] : vector<16x256xf32> to vector<256xf32>
    %62 = vector.shape_cast %61 : vector<256xf32> to vector<1x256xf32>
    %63 = arith.subf %62, %10 : vector<1x256xf32>
    %cst_23 = arith.constant 5.000000e+02 : f32
    %64 = vector.broadcast %cst_23 : f32 to vector<1x256xf32>
    %65 = arith.mulf %63, %64 : vector<1x256xf32>
    %66 = math.tanh %65 : vector<1x256xf32>
    %cst_24 = arith.constant 1.000000e+00 : f32
    %67 = vector.broadcast %cst_24 : f32 to vector<1x256xf32>
    %68 = arith.addf %66, %67 : vector<1x256xf32>
    %cst_25 = arith.constant 5.000000e-01 : f32
    %69 = vector.broadcast %cst_25 : f32 to vector<1x256xf32>
    %70 = arith.mulf %69, %68 : vector<1x256xf32>
    %71 = arith.addf %49, %70 : vector<1x256xf32>
    %c1_i32 = arith.constant 1 : i32
    %72 = vector.broadcast %c1_i32 : i32 to vector<1x256xi32>
    %73 = arith.addi %4, %72 : vector<1x256xi32>
    %c0_i32_26 = arith.constant 0 : i32
    %c15_i32_27 = arith.constant 15 : i32
    %74 = vector.broadcast %c0_i32_26 : i32 to vector<1x256xi32>
    %75 = arith.maxsi %74, %73 : vector<1x256xi32>
    %76 = vector.broadcast %c15_i32_27 : i32 to vector<1x256xi32>
    %77 = arith.minsi %76, %75 : vector<1x256xi32>
    %78 = tpu.iota {dimensions = array<i32: 0>} : vector<16x256xi32>
    %79 = vector.broadcast %77 : vector<1x256xi32> to vector<16x256xi32>
    %80 = arith.cmpi eq, %78, %79 : vector<16x256xi32>
    %cst_28 = arith.constant 0.000000e+00 : f32
    %81 = vector.broadcast %cst_28 : f32 to vector<16x256xf32>
    %82 = arith.select %80, %27, %81 : vector<16x256xi1>, vector<16x256xf32>
    %cst_29 = arith.constant dense<0.000000e+00> : vector<256xf32>
    %83 = vector.multi_reduction <add>, %82, %cst_29 [0] : vector<16x256xf32> to vector<256xf32>
    %84 = vector.shape_cast %83 : vector<256xf32> to vector<1x256xf32>
    %85 = arith.subf %84, %10 : vector<1x256xf32>
    %cst_30 = arith.constant 5.000000e+02 : f32
    %86 = vector.broadcast %cst_30 : f32 to vector<1x256xf32>
    %87 = arith.mulf %85, %86 : vector<1x256xf32>
    %88 = math.tanh %87 : vector<1x256xf32>
    %cst_31 = arith.constant 1.000000e+00 : f32
    %89 = vector.broadcast %cst_31 : f32 to vector<1x256xf32>
    %90 = arith.addf %88, %89 : vector<1x256xf32>
    %cst_32 = arith.constant 5.000000e-01 : f32
    %91 = vector.broadcast %cst_32 : f32 to vector<1x256xf32>
    %92 = arith.mulf %91, %90 : vector<1x256xf32>
    %93 = arith.addf %71, %92 : vector<1x256xf32>
    %c0_i32_33 = arith.constant 0 : i32
    %94 = vector.broadcast %c0_i32_33 : i32 to vector<1x256xi32>
    %95 = arith.addi %7, %94 : vector<1x256xi32>
    %c0_i32_34 = arith.constant 0 : i32
    %c15_i32_35 = arith.constant 15 : i32
    %96 = vector.broadcast %c0_i32_34 : i32 to vector<1x256xi32>
    %97 = arith.maxsi %96, %95 : vector<1x256xi32>
    %98 = vector.broadcast %c15_i32_35 : i32 to vector<1x256xi32>
    %99 = arith.minsi %98, %97 : vector<1x256xi32>
    %100 = tpu.iota {dimensions = array<i32: 0>} : vector<16x256xi32>
    %101 = vector.broadcast %99 : vector<1x256xi32> to vector<16x256xi32>
    %102 = arith.cmpi eq, %100, %101 : vector<16x256xi32>
    %103 = arith.extui %102 : vector<16x256xi1> to vector<16x256xi32>
    %104 = arith.sitofp %103 : vector<16x256xi32> to vector<16x256xf32>
    %105 = arith.truncf %104 : vector<16x256xf32> to vector<16x256xbf16>
    %cst_36 = arith.constant dense<0.000000e+00> : vector<32x256xf32>
    %106 = tpu.matmul %1, %105, %cst_36 {dimension_numbers = #tpu.dot_dimension_numbers<[1], [0], [0], [1], [0, 0, 1, 1], [], []>} : vector<32x16xbf16>, vector<16x256xbf16>, vector<32x256xf32> -> vector<32x256xf32>
    %107 = vector.extract_strided_slice %106 {offsets = [0, 0], sizes = [16, 256], strides = [1, 1]} : vector<32x256xf32> to vector<16x256xf32>
    %108 = vector.extract_strided_slice %106 {offsets = [16, 0], sizes = [16, 256], strides = [1, 1]} : vector<32x256xf32> to vector<16x256xf32>
    %109 = arith.addf %107, %108 : vector<16x256xf32>
    %c-1_i32_37 = arith.constant -1 : i32
    %110 = vector.broadcast %c-1_i32_37 : i32 to vector<1x256xi32>
    %111 = arith.addi %4, %110 : vector<1x256xi32>
    %c0_i32_38 = arith.constant 0 : i32
    %c15_i32_39 = arith.constant 15 : i32
    %112 = vector.broadcast %c0_i32_38 : i32 to vector<1x256xi32>
    %113 = arith.maxsi %112, %111 : vector<1x256xi32>
    %114 = vector.broadcast %c15_i32_39 : i32 to vector<1x256xi32>
    %115 = arith.minsi %114, %113 : vector<1x256xi32>
    %116 = tpu.iota {dimensions = array<i32: 0>} : vector<16x256xi32>
    %117 = vector.broadcast %115 : vector<1x256xi32> to vector<16x256xi32>
    %118 = arith.cmpi eq, %116, %117 : vector<16x256xi32>
    %cst_40 = arith.constant 0.000000e+00 : f32
    %119 = vector.broadcast %cst_40 : f32 to vector<16x256xf32>
    %120 = arith.select %118, %109, %119 : vector<16x256xi1>, vector<16x256xf32>
    %cst_41 = arith.constant dense<0.000000e+00> : vector<256xf32>
    %121 = vector.multi_reduction <add>, %120, %cst_41 [0] : vector<16x256xf32> to vector<256xf32>
    %122 = vector.shape_cast %121 : vector<256xf32> to vector<1x256xf32>
    %123 = arith.subf %122, %10 : vector<1x256xf32>
    %cst_42 = arith.constant 5.000000e+02 : f32
    %124 = vector.broadcast %cst_42 : f32 to vector<1x256xf32>
    %125 = arith.mulf %123, %124 : vector<1x256xf32>
    %126 = math.tanh %125 : vector<1x256xf32>
    %cst_43 = arith.constant 1.000000e+00 : f32
    %127 = vector.broadcast %cst_43 : f32 to vector<1x256xf32>
    %128 = arith.addf %126, %127 : vector<1x256xf32>
    %cst_44 = arith.constant 5.000000e-01 : f32
    %129 = vector.broadcast %cst_44 : f32 to vector<1x256xf32>
    %130 = arith.mulf %129, %128 : vector<1x256xf32>
    %131 = arith.addf %93, %130 : vector<1x256xf32>
    %c0_i32_45 = arith.constant 0 : i32
    %132 = vector.broadcast %c0_i32_45 : i32 to vector<1x256xi32>
    %133 = arith.addi %4, %132 : vector<1x256xi32>
    %c0_i32_46 = arith.constant 0 : i32
    %c15_i32_47 = arith.constant 15 : i32
    %134 = vector.broadcast %c0_i32_46 : i32 to vector<1x256xi32>
    %135 = arith.maxsi %134, %133 : vector<1x256xi32>
    %136 = vector.broadcast %c15_i32_47 : i32 to vector<1x256xi32>
    %137 = arith.minsi %136, %135 : vector<1x256xi32>
    %138 = tpu.iota {dimensions = array<i32: 0>} : vector<16x256xi32>
    %139 = vector.broadcast %137 : vector<1x256xi32> to vector<16x256xi32>
    %140 = arith.cmpi eq, %138, %139 : vector<16x256xi32>
    %cst_48 = arith.constant 0.000000e+00 : f32
    %141 = vector.broadcast %cst_48 : f32 to vector<16x256xf32>
    %142 = arith.select %140, %109, %141 : vector<16x256xi1>, vector<16x256xf32>
    %cst_49 = arith.constant dense<0.000000e+00> : vector<256xf32>
    %143 = vector.multi_reduction <add>, %142, %cst_49 [0] : vector<16x256xf32> to vector<256xf32>
    %144 = vector.shape_cast %143 : vector<256xf32> to vector<1x256xf32>
    %145 = arith.subf %144, %10 : vector<1x256xf32>
    %cst_50 = arith.constant 5.000000e+02 : f32
    %146 = vector.broadcast %cst_50 : f32 to vector<1x256xf32>
    %147 = arith.mulf %145, %146 : vector<1x256xf32>
    %148 = math.tanh %147 : vector<1x256xf32>
    %cst_51 = arith.constant 1.000000e+00 : f32
    %149 = vector.broadcast %cst_51 : f32 to vector<1x256xf32>
    %150 = arith.addf %148, %149 : vector<1x256xf32>
    %cst_52 = arith.constant 5.000000e-01 : f32
    %151 = vector.broadcast %cst_52 : f32 to vector<1x256xf32>
    %152 = arith.mulf %151, %150 : vector<1x256xf32>
    %153 = arith.addf %131, %152 : vector<1x256xf32>
    %c1_i32_53 = arith.constant 1 : i32
    %154 = vector.broadcast %c1_i32_53 : i32 to vector<1x256xi32>
    %155 = arith.addi %4, %154 : vector<1x256xi32>
    %c0_i32_54 = arith.constant 0 : i32
    %c15_i32_55 = arith.constant 15 : i32
    %156 = vector.broadcast %c0_i32_54 : i32 to vector<1x256xi32>
    %157 = arith.maxsi %156, %155 : vector<1x256xi32>
    %158 = vector.broadcast %c15_i32_55 : i32 to vector<1x256xi32>
    %159 = arith.minsi %158, %157 : vector<1x256xi32>
    %160 = tpu.iota {dimensions = array<i32: 0>} : vector<16x256xi32>
    %161 = vector.broadcast %159 : vector<1x256xi32> to vector<16x256xi32>
    %162 = arith.cmpi eq, %160, %161 : vector<16x256xi32>
    %cst_56 = arith.constant 0.000000e+00 : f32
    %163 = vector.broadcast %cst_56 : f32 to vector<16x256xf32>
    %164 = arith.select %162, %109, %163 : vector<16x256xi1>, vector<16x256xf32>
    %cst_57 = arith.constant dense<0.000000e+00> : vector<256xf32>
    %165 = vector.multi_reduction <add>, %164, %cst_57 [0] : vector<16x256xf32> to vector<256xf32>
    %166 = vector.shape_cast %165 : vector<256xf32> to vector<1x256xf32>
    %167 = arith.subf %166, %10 : vector<1x256xf32>
    %cst_58 = arith.constant 5.000000e+02 : f32
    %168 = vector.broadcast %cst_58 : f32 to vector<1x256xf32>
    %169 = arith.mulf %167, %168 : vector<1x256xf32>
    %170 = math.tanh %169 : vector<1x256xf32>
    %cst_59 = arith.constant 1.000000e+00 : f32
    %171 = vector.broadcast %cst_59 : f32 to vector<1x256xf32>
    %172 = arith.addf %170, %171 : vector<1x256xf32>
    %cst_60 = arith.constant 5.000000e-01 : f32
    %173 = vector.broadcast %cst_60 : f32 to vector<1x256xf32>
    %174 = arith.mulf %173, %172 : vector<1x256xf32>
    %175 = arith.addf %153, %174 : vector<1x256xf32>
    %c1_i32_61 = arith.constant 1 : i32
    %176 = vector.broadcast %c1_i32_61 : i32 to vector<1x256xi32>
    %177 = arith.addi %7, %176 : vector<1x256xi32>
    %c0_i32_62 = arith.constant 0 : i32
    %c15_i32_63 = arith.constant 15 : i32
    %178 = vector.broadcast %c0_i32_62 : i32 to vector<1x256xi32>
    %179 = arith.maxsi %178, %177 : vector<1x256xi32>
    %180 = vector.broadcast %c15_i32_63 : i32 to vector<1x256xi32>
    %181 = arith.minsi %180, %179 : vector<1x256xi32>
    %182 = tpu.iota {dimensions = array<i32: 0>} : vector<16x256xi32>
    %183 = vector.broadcast %181 : vector<1x256xi32> to vector<16x256xi32>
    %184 = arith.cmpi eq, %182, %183 : vector<16x256xi32>
    %185 = arith.extui %184 : vector<16x256xi1> to vector<16x256xi32>
    %186 = arith.sitofp %185 : vector<16x256xi32> to vector<16x256xf32>
    %187 = arith.truncf %186 : vector<16x256xf32> to vector<16x256xbf16>
    %cst_64 = arith.constant dense<0.000000e+00> : vector<32x256xf32>
    %188 = tpu.matmul %1, %187, %cst_64 {dimension_numbers = #tpu.dot_dimension_numbers<[1], [0], [0], [1], [0, 0, 1, 1], [], []>} : vector<32x16xbf16>, vector<16x256xbf16>, vector<32x256xf32> -> vector<32x256xf32>
    %189 = vector.extract_strided_slice %188 {offsets = [0, 0], sizes = [16, 256], strides = [1, 1]} : vector<32x256xf32> to vector<16x256xf32>
    %190 = vector.extract_strided_slice %188 {offsets = [16, 0], sizes = [16, 256], strides = [1, 1]} : vector<32x256xf32> to vector<16x256xf32>
    %191 = arith.addf %189, %190 : vector<16x256xf32>
    %c-1_i32_65 = arith.constant -1 : i32
    %192 = vector.broadcast %c-1_i32_65 : i32 to vector<1x256xi32>
    %193 = arith.addi %4, %192 : vector<1x256xi32>
    %c0_i32_66 = arith.constant 0 : i32
    %c15_i32_67 = arith.constant 15 : i32
    %194 = vector.broadcast %c0_i32_66 : i32 to vector<1x256xi32>
    %195 = arith.maxsi %194, %193 : vector<1x256xi32>
    %196 = vector.broadcast %c15_i32_67 : i32 to vector<1x256xi32>
    %197 = arith.minsi %196, %195 : vector<1x256xi32>
    %198 = tpu.iota {dimensions = array<i32: 0>} : vector<16x256xi32>
    %199 = vector.broadcast %197 : vector<1x256xi32> to vector<16x256xi32>
    %200 = arith.cmpi eq, %198, %199 : vector<16x256xi32>
    %cst_68 = arith.constant 0.000000e+00 : f32
    %201 = vector.broadcast %cst_68 : f32 to vector<16x256xf32>
    %202 = arith.select %200, %191, %201 : vector<16x256xi1>, vector<16x256xf32>
    %cst_69 = arith.constant dense<0.000000e+00> : vector<256xf32>
    %203 = vector.multi_reduction <add>, %202, %cst_69 [0] : vector<16x256xf32> to vector<256xf32>
    %204 = vector.shape_cast %203 : vector<256xf32> to vector<1x256xf32>
    %205 = arith.subf %204, %10 : vector<1x256xf32>
    %cst_70 = arith.constant 5.000000e+02 : f32
    %206 = vector.broadcast %cst_70 : f32 to vector<1x256xf32>
    %207 = arith.mulf %205, %206 : vector<1x256xf32>
    %208 = math.tanh %207 : vector<1x256xf32>
    %cst_71 = arith.constant 1.000000e+00 : f32
    %209 = vector.broadcast %cst_71 : f32 to vector<1x256xf32>
    %210 = arith.addf %208, %209 : vector<1x256xf32>
    %cst_72 = arith.constant 5.000000e-01 : f32
    %211 = vector.broadcast %cst_72 : f32 to vector<1x256xf32>
    %212 = arith.mulf %211, %210 : vector<1x256xf32>
    %213 = arith.addf %175, %212 : vector<1x256xf32>
    %c0_i32_73 = arith.constant 0 : i32
    %214 = vector.broadcast %c0_i32_73 : i32 to vector<1x256xi32>
    %215 = arith.addi %4, %214 : vector<1x256xi32>
    %c0_i32_74 = arith.constant 0 : i32
    %c15_i32_75 = arith.constant 15 : i32
    %216 = vector.broadcast %c0_i32_74 : i32 to vector<1x256xi32>
    %217 = arith.maxsi %216, %215 : vector<1x256xi32>
    %218 = vector.broadcast %c15_i32_75 : i32 to vector<1x256xi32>
    %219 = arith.minsi %218, %217 : vector<1x256xi32>
    %220 = tpu.iota {dimensions = array<i32: 0>} : vector<16x256xi32>
    %221 = vector.broadcast %219 : vector<1x256xi32> to vector<16x256xi32>
    %222 = arith.cmpi eq, %220, %221 : vector<16x256xi32>
    %cst_76 = arith.constant 0.000000e+00 : f32
    %223 = vector.broadcast %cst_76 : f32 to vector<16x256xf32>
    %224 = arith.select %222, %191, %223 : vector<16x256xi1>, vector<16x256xf32>
    %cst_77 = arith.constant dense<0.000000e+00> : vector<256xf32>
    %225 = vector.multi_reduction <add>, %224, %cst_77 [0] : vector<16x256xf32> to vector<256xf32>
    %226 = vector.shape_cast %225 : vector<256xf32> to vector<1x256xf32>
    %227 = arith.subf %226, %10 : vector<1x256xf32>
    %cst_78 = arith.constant 5.000000e+02 : f32
    %228 = vector.broadcast %cst_78 : f32 to vector<1x256xf32>
    %229 = arith.mulf %227, %228 : vector<1x256xf32>
    %230 = math.tanh %229 : vector<1x256xf32>
    %cst_79 = arith.constant 1.000000e+00 : f32
    %231 = vector.broadcast %cst_79 : f32 to vector<1x256xf32>
    %232 = arith.addf %230, %231 : vector<1x256xf32>
    %cst_80 = arith.constant 5.000000e-01 : f32
    %233 = vector.broadcast %cst_80 : f32 to vector<1x256xf32>
    %234 = arith.mulf %233, %232 : vector<1x256xf32>
    %235 = arith.addf %213, %234 : vector<1x256xf32>
    %c1_i32_81 = arith.constant 1 : i32
    %236 = vector.broadcast %c1_i32_81 : i32 to vector<1x256xi32>
    %237 = arith.addi %4, %236 : vector<1x256xi32>
    %c0_i32_82 = arith.constant 0 : i32
    %c15_i32_83 = arith.constant 15 : i32
    %238 = vector.broadcast %c0_i32_82 : i32 to vector<1x256xi32>
    %239 = arith.maxsi %238, %237 : vector<1x256xi32>
    %240 = vector.broadcast %c15_i32_83 : i32 to vector<1x256xi32>
    %241 = arith.minsi %240, %239 : vector<1x256xi32>
    %242 = tpu.iota {dimensions = array<i32: 0>} : vector<16x256xi32>
    %243 = vector.broadcast %241 : vector<1x256xi32> to vector<16x256xi32>
    %244 = arith.cmpi eq, %242, %243 : vector<16x256xi32>
    %cst_84 = arith.constant 0.000000e+00 : f32
    %245 = vector.broadcast %cst_84 : f32 to vector<16x256xf32>
    %246 = arith.select %244, %191, %245 : vector<16x256xi1>, vector<16x256xf32>
    %cst_85 = arith.constant dense<0.000000e+00> : vector<256xf32>
    %247 = vector.multi_reduction <add>, %246, %cst_85 [0] : vector<16x256xf32> to vector<256xf32>
    %248 = vector.shape_cast %247 : vector<256xf32> to vector<1x256xf32>
    %249 = arith.subf %248, %10 : vector<1x256xf32>
    %cst_86 = arith.constant 5.000000e+02 : f32
    %250 = vector.broadcast %cst_86 : f32 to vector<1x256xf32>
    %251 = arith.mulf %249, %250 : vector<1x256xf32>
    %252 = math.tanh %251 : vector<1x256xf32>
    %cst_87 = arith.constant 1.000000e+00 : f32
    %253 = vector.broadcast %cst_87 : f32 to vector<1x256xf32>
    %254 = arith.addf %252, %253 : vector<1x256xf32>
    %cst_88 = arith.constant 5.000000e-01 : f32
    %255 = vector.broadcast %cst_88 : f32 to vector<1x256xf32>
    %256 = arith.mulf %255, %254 : vector<1x256xf32>
    %257 = arith.addf %235, %256 : vector<1x256xf32>
    %cst_89 = arith.constant 0.111111112 : f32
    %258 = vector.broadcast %cst_89 : f32 to vector<1x256xf32>
    %259 = arith.mulf %257, %258 : vector<1x256xf32>
    %c0_90 = arith.constant 0 : index
    %260 = arith.index_cast %c0_i32 : i32 to index
    %c0_91 = arith.constant 0 : index
    %261 = vector.load %arg6[%c0_90, %260, %c0_91] : memref<1x1x256xf32, #tpu.memory_space<vmem>>, vector<1x1x256xf32>
    %262 = vector.shape_cast %261 : vector<1x1x256xf32> to vector<1x256xf32>
    %263 = vector.shape_cast %259 : vector<1x256xf32> to vector<1x1x256xf32>
    tpu.vector_store %arg6[%c0_90, %260, %c0_91], %263 {strides = array<i32>} : memref<1x1x256xf32, #tpu.memory_space<vmem>>, vector<1x1x256xf32>,
    %c1_i32_92 = arith.constant 1 : i32
    return
  }
  func.func @transform_0(%arg0: i32, %arg1: i32) -> (i32, i32, i32) {
    %c0_i32 = arith.constant 0 : i32
    %c0_i32_0 = arith.constant 0 : i32
    return %arg0, %arg1, %c0_i32 : i32, i32, i32
  }
  func.func @transform_1(%arg0: i32, %arg1: i32) -> (i32, i32, i32) {
    %c0_i32 = arith.constant 0 : i32
    %c0_i32_0 = arith.constant 0 : i32
    return %arg0, %arg1, %c0_i32 : i32, i32, i32
  }
  func.func @transform_2(%arg0: i32, %arg1: i32) -> (i32, i32, i32) {
    %c0_i32 = arith.constant 0 : i32
    %c0_i32_0 = arith.constant 0 : i32
    return %arg0, %arg1, %c0_i32 : i32, i32, i32
  }
  func.func @transform_3(%arg0: i32, %arg1: i32) -> (i32, i32, i32) {
    %c0_i32 = arith.constant 0 : i32
    %c0_i32_0 = arith.constant 0 : i32
    %c0_i32_1 = arith.constant 0 : i32
    return %arg0, %c0_i32, %c0_i32_0 : i32, i32, i32
  }
  func.func @transform_4(%arg0: i32, %arg1: i32) -> (i32, i32, i32) {
    %c0_i32 = arith.constant 0 : i32
    %c0_i32_0 = arith.constant 0 : i32
    return %arg0, %arg1, %c0_i32 : i32, i32, i32
  }
}

</mosaic_0001>

<llo_original>
// kernel: tpu_custom_call.1
$region0: #{tpu_custom_call.1}
  #allocation0 [shape = 'u32[]', space=smem, size = 0x4, offset = 0x4, fixed_abs, tag = 'smem constant byte address 0x4 - core index']
  #allocation1 [shape = 'u32[144,128]{1,0:T(1,128)}', space=vmem, size = 0x12000, scoped, tag = 'internal scratch']
  %s0 = inlined_call_operand.vmem [shape: s32[2,1,256], index: 0, kind: input, shape index: {}]
  %s1 = inlined_call_operand.vmem [shape: s32[2,1,256], index: 1, kind: input, shape index: {}]
  %s2 = inlined_call_operand.vmem [shape: f32[2,1,256], index: 2, kind: input, shape index: {}]
  %s3 = inlined_call_operand.vmem [shape: bf16[2,32,16], index: 3, kind: input, shape index: {}]
  %s4 = inlined_call_operand.hbm [shape: f32[2,1,256], index: 4, kind: output, shape index: {}]
  %s5 = sld [smem:[#allocation0]]
  $region49: #{tpu_custom_call.1} parent=0
    _
  %s7 = ssub.s32 1, %s5
  %s8 = scalar_select 0, %s7, %s5
  $region1: #{tpu_custom_call.1} parent=0
    #allocation2 [shape = 'u8[2048]{0}', space=vmem, size = 0x800, scoped, tag = 'output window, operand 0']
    #allocation3 [shape = 's32[2]{0}', space=sflag, size = 0x8, scoped, tag = 'scoped memory for tpu_custom_call.1']
    %9 = vsyncpa [#allocation3], 0
    %s10 = scalar_lea.sflag [#allocation3], 1
    %11 = vsyncpa %s10, 0
    loop: start=0, step=1, limit=4
    $region2: #{tpu_custom_call.1} parent=1 // loop_pre_header
      _
    $region3: #{tpu_custom_call.1} parent=1 // loop_header
      %s13 = sphi 0, %s17
      %p14 = scmp.ge.s32.totalorder %s13, 4
      %s20 = sphi 0, %s32
      %s21 = sphi 0, %s28
      %s22 = sphi 0, %s20
      %s23 = sphi 0, %s21
      %s24 = sphi 0, %s22
      %s25 = sphi 0, %s23
      %s37 = sphi 0, %s39
      %s40 = sphi 0, %s37
      %s41 = sphi 0, %s40
      %s57 = sphi 0, %s41
      %s65 = sphi 0, %s67
      %s68 = sphi 0, %s65
      %s69 = sphi 0, %s68
      %s85 = sphi 0, %s69
      %s93 = sphi 0, %s95
      %s96 = sphi 0, %s93
      %s97 = sphi 0, %s96
      %s113 = sphi 0, %s97
      %s119 = sphi 0, %s121
      %s122 = sphi 0, %s119
      %s123 = sphi 0, %s122
      %s139 = sphi 0, %s123
      %s147 = sphi 0, %s149
      %s150 = sphi 0, %s147
      %s151 = sphi 0, %s150
      %s167 = sphi 0, %s151
    $region4: #{tpu_custom_call.1} parent=1 // loop_header_branch
      %16 = sbr.rel (%p14) target = $region8
    $region5: #{tpu_custom_call.1} parent=1 // loop_body
      %s18 = ssub.s32 %s13, 1
      %s19 = ssub.s32 %s13, 2
      %s26 = sadd.s32 1, %s21
      %p27 = scmp.ge.s32.totalorder %s26, 1
      %s28 = scalar_select %p27, 0, %s26
      %s29 = sadd.s32 1, %s20
      %s30 = scalar_select %p27, %s29, %s20
      %p31 = scmp.ge.s32.totalorder %s30, 2
      %s32 = scalar_select %p31, 0, %s30
      %s33 = ssub.s32 %s20, %s32
      %s34 = ssub.s32 %s21, %s28
      %s35 = sor.u32 %s33, %s34
      %p36 = scmp.eq.s32.totalorder %s35, 0
      %s38 = sadd.s32 %s37, 1
      %s39 = scalar_select %p36, %s37, %s38
      %p42 = pneg %p36
      %p43 = scmp.eq.s32.totalorder %s13, 1
      %p44 = por %p42, %p43
      %p45 = scmp.ne.s32.totalorder %s37, %s40
      %p46 = scmp.eq.s32.totalorder %s13, 0
      %p47 = por %p45, %p46
      %p48 = scmp.ne.s32.totalorder %s37, %s40
      %p49 = scmp.eq.s32.totalorder %s18, 1
      %p50 = por %p48, %p49
      %p51 = scmp.ne.s32.totalorder %s40, %s41
      %p52 = scmp.eq.s32.totalorder %s18, 0
      %p53 = por %p51, %p52
      %p54 = scmp.ne.s32.totalorder %s40, %s41
      %p55 = scmp.eq.s32.totalorder %s19, 1
      %p56 = por %p54, %p55
      %p58 = scmp.ne.s32.totalorder %s41, %s57
      %p59 = scmp.eq.s32.totalorder %s19, 0
      %p60 = por %p58, %p59
      %s61 = ssub.s32 %s20, %s32
      %s62 = ssub.s32 %s21, %s28
      %s63 = sor.u32 %s61, %s62
      %p64 = scmp.eq.s32.totalorder %s63, 0
      %s66 = sadd.s32 %s65, 1
      %s67 = scalar_select %p64, %s65, %s66
      %p70 = pneg %p64
      %p71 = scmp.eq.s32.totalorder %s13, 1
      %p72 = por %p70, %p71
      %p73 = scmp.ne.s32.totalorder %s65, %s68
      %p74 = scmp.eq.s32.totalorder %s13, 0
      %p75 = por %p73, %p74
      %p76 = scmp.ne.s32.totalorder %s65, %s68
      %p77 = scmp.eq.s32.totalorder %s18, 1
      %p78 = por %p76, %p77
      %p79 = scmp.ne.s32.totalorder %s68, %s69
      %p80 = scmp.eq.s32.totalorder %s18, 0
      %p81 = por %p79, %p80
      %p82 = scmp.ne.s32.totalorder %s68, %s69
      %p83 = scmp.eq.s32.totalorder %s19, 1
      %p84 = por %p82, %p83
      %p86 = scmp.ne.s32.totalorder %s69, %s85
      %p87 = scmp.eq.s32.totalorder %s19, 0
      %p88 = por %p86, %p87
      %s89 = ssub.s32 %s20, %s32
      %s90 = ssub.s32 %s21, %s28
      %s91 = sor.u32 %s89, %s90
      %p92 = scmp.eq.s32.totalorder %s91, 0
      %s94 = sadd.s32 %s93, 1
      %s95 = scalar_select %p92, %s93, %s94
      %p98 = pneg %p92
      %p99 = scmp.eq.s32.totalorder %s13, 1
      %p100 = por %p98, %p99
      %p101 = scmp.ne.s32.totalorder %s93, %s96
      %p102 = scmp.eq.s32.totalorder %s13, 0
      %p103 = por %p101, %p102
      %p104 = scmp.ne.s32.totalorder %s93, %s96
      %p105 = scmp.eq.s32.totalorder %s18, 1
      %p106 = por %p104, %p105
      %p107 = scmp.ne.s32.totalorder %s96, %s97
      %p108 = scmp.eq.s32.totalorder %s18, 0
      %p109 = por %p107, %p108
      %p110 = scmp.ne.s32.totalorder %s96, %s97
      %p111 = scmp.eq.s32.totalorder %s19, 1
      %p112 = por %p110, %p111
      %p114 = scmp.ne.s32.totalorder %s97, %s113
      %p115 = scmp.eq.s32.totalorder %s19, 0
      %p116 = por %p114, %p115
      %s117 = ssub.s32 %s20, %s32
      %p118 = scmp.eq.s32.totalorder %s117, 0
      %s120 = sadd.s32 %s119, 1
      %s121 = scalar_select %p118, %s119, %s120
      %p124 = pneg %p118
      %p125 = scmp.eq.s32.totalorder %s13, 1
      %p126 = por %p124, %p125
      %p127 = scmp.ne.s32.totalorder %s119, %s122
      %p128 = scmp.eq.s32.totalorder %s13, 0
      %p129 = por %p127, %p128
      %p130 = scmp.ne.s32.totalorder %s119, %s122
      %p131 = scmp.eq.s32.totalorder %s18, 1
      %p132 = por %p130, %p131
      %p133 = scmp.ne.s32.totalorder %s122, %s123
      %p134 = scmp.eq.s32.totalorder %s18, 0
      %p135 = por %p133, %p134
      %p136 = scmp.ne.s32.totalorder %s122, %s123
      %p137 = scmp.eq.s32.totalorder %s19, 1
      %p138 = por %p136, %p137
      %p140 = scmp.ne.s32.totalorder %s123, %s139
      %p141 = scmp.eq.s32.totalorder %s19, 0
      %p142 = por %p140, %p141
      %s143 = ssub.s32 %s20, %s32
      %s144 = ssub.s32 %s21, %s28
      %s145 = sor.u32 %s143, %s144
      %p146 = scmp.eq.s32.totalorder %s145, 0
      %s148 = sadd.s32 %s147, 1
      %s149 = scalar_select %p146, %s147, %s148
      %p152 = pneg %p146
      %p153 = scmp.eq.s32.totalorder %s13, 1
      %p154 = por %p152, %p153
      %p155 = scmp.ne.s32.totalorder %s147, %s150
      %p156 = scmp.eq.s32.totalorder %s13, 0
      %p157 = por %p155, %p156
      %p158 = scmp.ne.s32.totalorder %s147, %s150
      %p159 = scmp.eq.s32.totalorder %s18, 1
      %p160 = por %p158, %p159
      %p161 = scmp.ne.s32.totalorder %s150, %s151
      %p162 = scmp.eq.s32.totalorder %s18, 0
      %p163 = por %p161, %p162
      %p164 = scmp.ne.s32.totalorder %s150, %s151
      %p165 = scmp.eq.s32.totalorder %s19, 1
      %p166 = por %p164, %p165
      %p168 = scmp.ne.s32.totalorder %s151, %s167
      %p169 = scmp.eq.s32.totalorder %s19, 0
      %p170 = por %p168, %p169
      %p171 = scmp.le.s32.totalorder 1, %s13
      %p172 = scmp.lt.s32.totalorder %s13, 3
      %p173 = pnand %p171, %p172
      %p174 = pneg %p173
      // Predicated region
      $region9: #{tpu_custom_call.1} parent=5 // pred_check
        _
      $region10: #{tpu_custom_call.1} parent=5 // pred_check_branch
        %176 = sbr.rel (%p173) target = $region12
      $region11: #{tpu_custom_call.1} parent=5 // pred_region
        %s177 = ssub.s32 %s13, 1
      $region12: #{tpu_custom_call.1} parent=5 // pred_fallthru
        _
      %p178 = scmp.lt.s32.totalorder %s13, 2
      // Predicated region
      $region13: #{tpu_custom_call.1} parent=5 // pred_check
        %p179 = pneg %p178
      $region14: #{tpu_custom_call.1} parent=5 // pred_check_branch
        %181 = sbr.rel (%p179) target = $region16
      $region15: #{tpu_custom_call.1} parent=5 // pred_region
        // Predicated region
        $region17: #{tpu_custom_call.1} parent=15 // pred_check
          %p182 = pneg %p47
        $region18: #{tpu_custom_call.1} parent=15 // pred_check_branch
          %184 = sbr.rel (%p182) target = $region20
        $region19: #{tpu_custom_call.1} parent=15 // pred_region
          %p185 = scmp.lt.s32.totalorder %s20, 1
          %s186 = scalar_select %p185, %s20, 1
          %p187 = scmp.lt.s32.totalorder %s21, 0
          %s188 = scalar_select %p187, %s21, 0
          %s189 = smul.addr %s188, 2
          %s190 = smul.addr %s186, 2
          %s191 = sadd.s32 %s189, %s190
          %s192 = scalar_lea.vmem %s0, %s191
        $region20: #{tpu_custom_call.1} parent=15 // pred_fallthru
          _
        // Predicated region
        $region21: #{tpu_custom_call.1} parent=15 // pred_check
          %p193 = pneg %p75
        $region22: #{tpu_custom_call.1} parent=15 // pred_check_branch
          %195 = sbr.rel (%p193) target = $region24
        $region23: #{tpu_custom_call.1} parent=15 // pred_region
          %p196 = scmp.lt.s32.totalorder %s20, 1
          %s197 = scalar_select %p196, %s20, 1
          %p198 = scmp.lt.s32.totalorder %s21, 0
          %s199 = scalar_select %p198, %s21, 0
          %s200 = smul.addr %s199, 2
          %s201 = smul.addr %s197, 2
          %s202 = sadd.s32 %s200, %s201
          %s203 = scalar_lea.vmem %s1, %s202
        $region24: #{tpu_custom_call.1} parent=15 // pred_fallthru
          _
        // Predicated region
        $region25: #{tpu_custom_call.1} parent=15 // pred_check
          %p204 = pneg %p103
        $region26: #{tpu_custom_call.1} parent=15 // pred_check_branch
          %206 = sbr.rel (%p204) target = $region28
        $region27: #{tpu_custom_call.1} parent=15 // pred_region
          %p207 = scmp.lt.s32.totalorder %s20, 1
          %s208 = scalar_select %p207, %s20, 1
          %p209 = scmp.lt.s32.totalorder %s21, 0
          %s210 = scalar_select %p209, %s21, 0
          %s211 = smul.addr %s210, 2
          %s212 = smul.addr %s208, 2
          %s213 = sadd.s32 %s211, %s212
          %s214 = scalar_lea.vmem %s2, %s213
        $region28: #{tpu_custom_call.1} parent=15 // pred_fallthru
          _
        // Predicated region
        $region29: #{tpu_custom_call.1} parent=15 // pred_check
          %p215 = pneg %p129
        $region30: #{tpu_custom_call.1} parent=15 // pred_check_branch
          %217 = sbr.rel (%p215) target = $region32
        $region31: #{tpu_custom_call.1} parent=15 // pred_region
          %p218 = scmp.lt.s32.totalorder %s20, 1
          %s219 = scalar_select %p218, %s20, 1
          %s220 = smul.addr %s219, 4
          %s221 = smul.addr %s220, 4
          %s222 = scalar_lea.vmem %s3, %s221
        $region32: #{tpu_custom_call.1} parent=15 // pred_fallthru
          _
      $region16: #{tpu_custom_call.1} parent=5 // pred_fallthru
        _
      %p223 = scmp.le.s32.totalorder 1, %s13
      %p224 = scmp.lt.s32.totalorder %s13, 3
      %p225 = pnand %p223, %p224
      %p226 = pneg %p225
      // Predicated region
      $region33: #{tpu_custom_call.1} parent=5 // pred_check
        _
      $region34: #{tpu_custom_call.1} parent=5 // pred_check_branch
        %228 = sbr.rel (%p225) target = $region36
      $region35: #{tpu_custom_call.1} parent=5 // pred_region
        %s229 = ssub.s32 %s13, 1
        %p230 = scmp.lt.s32.totalorder %s22, 1
        %s231 = scalar_select %p230, %s22, 1
        %p232 = scmp.lt.s32.totalorder %s23, 0
        %s233 = scalar_select %p232, %s23, 0
        %s234 = smul.addr %s233, 2
        %s235 = smul.addr %s231, 2
        %s236 = sadd.s32 %s234, %s235
        %s237 = scalar_lea.vmem %s0, %s236
        %p238 = pneg %p53
        %p239 = pneg %p50
        %p240 = scmp.lt.s32.totalorder %s22, 1
        %s241 = scalar_select %p240, %s22, 1
        %p242 = scmp.lt.s32.totalorder %s23, 0
        %s243 = scalar_select %p242, %s23, 0
        %s244 = smul.addr %s243, 2
        %s245 = smul.addr %s241, 2
        %s246 = sadd.s32 %s244, %s245
        %s247 = scalar_lea.vmem %s1, %s246
        %p248 = pneg %p81
        %p249 = pneg %p78
        %p250 = scmp.lt.s32.totalorder %s22, 1
        %s251 = scalar_select %p250, %s22, 1
        %p252 = scmp.lt.s32.totalorder %s23, 0
        %s253 = scalar_select %p252, %s23, 0
        %s254 = smul.addr %s253, 2
        %s255 = smul.addr %s251, 2
        %s256 = sadd.s32 %s254, %s255
        %s257 = scalar_lea.vmem %s2, %s256
        %p258 = pneg %p109
        %p259 = pneg %p106
        %p260 = scmp.lt.s32.totalorder %s22, 1
        %s261 = scalar_select %p260, %s22, 1
        %s262 = smul.addr %s261, 4
        %s263 = smul.addr %s262, 4
        %s264 = scalar_lea.vmem %s3, %s263
        %p265 = pneg %p135
        %p266 = pneg %p132
        %p267 = pneg %p163
        %p268 = pneg %p160
        %s269 = sand.u32 %s150, 1
        %s270 = scalar_lea.sflag [#allocation3], %s269
        %s271 = sand.u32 %s150, 1
        %s272 = smul.addr %s271, 2
        %s273 = scalar_lea.vmem [#allocation2], %s272
        %p274 = scmp.lt.s32.totalorder %s22, 1
        %s275 = scalar_select %p274, %s22, 1
        %p276 = scmp.lt.s32.totalorder %s23, 0
        %s277 = scalar_select %p276, %s23, 0
        %s278 = smul.addr %s277, 2
        %s279 = smul.addr %s275, 2
        %s280 = sadd.s32 %s278, %s279
        %s281 = scalar_lea.vmem %s0, %s280
        %p282 = scmp.lt.s32.totalorder %s22, 1
        %s283 = scalar_select %p282, %s22, 1
        %p284 = scmp.lt.s32.totalorder %s23, 0
        %s285 = scalar_select %p284, %s23, 0
        %s286 = smul.addr %s285, 2
        %s287 = smul.addr %s283, 2
        %s288 = sadd.s32 %s286, %s287
        %s289 = scalar_lea.vmem %s1, %s288
        %p290 = scmp.lt.s32.totalorder %s22, 1
        %s291 = scalar_select %p290, %s22, 1
        %p292 = scmp.lt.s32.totalorder %s23, 0
        %s293 = scalar_select %p292, %s23, 0
        %s294 = smul.addr %s293, 2
        %s295 = smul.addr %s291, 2
        %s296 = sadd.s32 %s294, %s295
        %s297 = scalar_lea.vmem %s2, %s296
        %p298 = scmp.lt.s32.totalorder %s22, 1
        %s299 = scalar_select %p298, %s22, 1
        %s300 = smul.addr %s299, 4
        %s301 = smul.addr %s300, 4
        %s302 = scalar_lea.vmem %s3, %s301
        %v304 = vld [vmem:[%s302] sm:$0xf]
        %v305 = vld [vmem:[%s302 + $0x4] sm:$0xf]
        %v306 = vld [vmem:[%s302 + $0x8] sm:$0xf]
        %v307 = vld [vmem:[%s302 + $0xc] sm:$0xf]
        %v308 = vld [vmem:[%s281] sm:$0x3]
        %v309 = vld [vmem:[%s289] sm:$0x3]
        %v310 = vld [vmem:[%s297] sm:$0x3]
        %v311 = vadd.s32 %v309, 4294967295
        %vm312 = vcmp.gt.s32.totalorder %v311, 0
        %v313 = vsel %vm312, %v311, 0
        %vm314 = vcmp.lt.s32.totalorder %v313, 15
        %v315 = vsel %vm314, %v313, 15
        %v316 = vlaneseq
        %v317 = vshrl.u32 %v316, 7
        %v318 = vadd.s32 %v317, 8
        %v319 = vlaneseq
        %v320 = vshrl.u32 %v319, 7
        %v321 = vsub.s32 0, %v320
        %v322 = vrot.slane %v315, %v321
        %v323 = vlaneseq
        %v324 = vshrl.u32 %v323, 7
        %v325 = vsub.s32 1, %v324
        %v326 = vrot.slane %v315, %v325
        %vm327 = vcmp.eq.s32.totalorder %v317, %v322
        %vm328 = vcmp.eq.s32.totalorder %v317, %v326
        %vm329 = vcmp.eq.s32.totalorder %v318, %v322
        %vm330 = vcmp.eq.s32.totalorder %v318, %v326
        %v331 = vsel %vm327, 1, 0
        %v332 = vsel %vm328, 1, 0
        %v333 = vsel %vm329, 1, 0
        %v334 = vsel %vm330, 1, 0
        %v335 = vcvt.s32.f32 %v331
        %v336 = vcvt.s32.f32 %v332
        %v337 = vcvt.s32.f32 %v333
        %v338 = vcvt.s32.f32 %v334
        %v339 = vpack.c.bf16 %v337, %v335
        %v340 = vpack.c.bf16 %v338, %v336
        %v345 = vunpack.c.l.b16 %v304
        %v346 = vunpack.c.l.b16 %v305
        %v347 = vunpack.c.l.b16 %v306
        %v348 = vunpack.c.l.b16 %v307
        %v349 = vpack.c.b16 %v346, %v345
        %v350 = vpack.c.b16 %v348, %v347
        %vm351 = vcmask 130048
        %v353 = vsel %vm351, %v349, 0
        %v356 = vsel %vm351, %v350, 0
        %358 = vmatprep.subr.bf16.mxu0 0
        %359 = vmatpush1.bf16.msra.mxu0 0
        %360 = vmatprep.subr.bf16.mxu0 0
        %361 = vmatpush1.bf16.msra.mxu0 0
        %362 = vmatprep.subr.bf16.mxu0 0
        %363 = vmatpush1.bf16.msra.mxu0 0
        %364 = vmatprep.subr.bf16.mxu0 0
        %365 = vmatpush1.bf16.msra.mxu0 0
        %366 = vmatprep.subr.bf16.mxu0 0
        %367 = vmatpush1.bf16.msra.mxu0 0
        %368 = vmatprep.subr.bf16.mxu0 0
        %369 = vmatpush1.bf16.msra.mxu0 0
        %370 = vmatprep.subr.bf16.mxu0 0
        %371 = vmatpush1.bf16.msra.mxu0 0
        %372 = vmatprep.subr.bf16.mxu0 %v340
        %373 = vmatpush1.bf16.msra.mxu0 %v339
        %374 = vmatprep.subr.bf16.mxu0 0
        %375 = vmatpush2.bf16.msra.mxu0 0
        %376 = vmatprep.subr.bf16.mxu0 0
        %377 = vmatpush2.bf16.msra.mxu0 0
        %378 = vmatprep.subr.bf16.mxu0 0
        %379 = vmatpush2.bf16.msra.mxu0 0
        %380 = vmatprep.subr.bf16.mxu0 0
        %381 = vmatpush2.bf16.msra.mxu0 0
        %382 = vmatprep.subr.bf16.mxu0 0
        %383 = vmatpush2.bf16.msra.mxu0 0
        %384 = vmatprep.subr.bf16.mxu0 0
        %385 = vmatpush2.bf16.msra.mxu0 0
        %386 = vmatprep.subr.bf16.mxu0 0
        %387 = vmatpush2.bf16.msra.mxu0 0
        %388 = vmatprep.subr.bf16.mxu0 0
        %389 = vmatpush2.bf16.msra.mxu0 0
        %390 = vmatprep.mubr.bf16.mxu0 0
        %391 = vmatmul.mubr.bf16.gmra.mxu0 %v353
        %v392 = vpop.f32.mrf.mxu0
        %v393 = vadd.f32 0.0, %v392
        %v394 = vpop.f32.mrf.mxu0
        %v395 = vadd.f32 0.0, %v394
        %v396 = vpop.f32.mrf.mxu0
        %v397 = vadd.f32 0.0, %v396
        %v398 = vpop.f32.mrf.mxu0
        %v399 = vadd.f32 0.0, %v398
        %400 = vmatprep.mubr.bf16.mxu0 0
        %401 = vmatmul.mubr.bf16.gmra.mxu0 %v356
        %v402 = vpop.f32.mrf.mxu0
        %v403 = vadd.f32 0.0, %v402
        %v404 = vpop.f32.mrf.mxu0
        %v405 = vadd.f32 0.0, %v404
        %v406 = vpop.f32.mrf.mxu0
        %v407 = vadd.f32 0.0, %v406
        %v408 = vpop.f32.mrf.mxu0
        %v409 = vadd.f32 0.0, %v408
        %410 = vdwg.mxu0
        %v411 = vadd.f32 %v393, %v403
        %v412 = vadd.f32 %v395, %v405
        %v413 = vadd.f32 %v397, %v407
        %v414 = vadd.f32 %v399, %v409
        %v415 = vadd.s32 %v308, 4294967295
        %vm416 = vcmp.gt.s32.totalorder %v415, 0
        %v417 = vsel %vm416, %v415, 0
        %vm418 = vcmp.lt.s32.totalorder %v417, 15
        %v419 = vsel %vm418, %v417, 15
        %v420 = vlaneseq
        %v421 = vshrl.u32 %v420, 7
        %v422 = vsub.s32 0, %v421
        %v423 = vrot.slane %v419, %v422
        %v424 = vlaneseq
        %v425 = vshrl.u32 %v424, 7
        %v426 = vsub.s32 1, %v425
        %v427 = vrot.slane %v419, %v426
        %vm428 = vcmp.eq.s32.totalorder %v317, %v423
        %vm429 = vcmp.eq.s32.totalorder %v317, %v427
        %vm430 = vcmp.eq.s32.totalorder %v318, %v423
        %vm431 = vcmp.eq.s32.totalorder %v318, %v427
        %v432 = vsel %vm428, %v411, 0.0
        %v433 = vsel %vm429, %v412, 0.0
        %v434 = vsel %vm430, %v413, 0.0
        %v435 = vsel %vm431, %v414, 0.0
        %v436 = vadd.f32 %v432, %v434
        %v437 = vrot.slane %v436, 4
        %v438 = vadd.f32 %v436, %v437
        %v439 = vrot.slane %v438, 2
        %v440 = vadd.f32 %v438, %v439
        %v441 = vrot.slane %v440, 1
        %v442 = vadd.f32 %v440, %v441
        %v443 = vadd.f32 %v433, %v435
        %v444 = vrot.slane %v443, 4
        %v445 = vadd.f32 %v443, %v444
        %v446 = vrot.slane %v445, 2
        %v447 = vadd.f32 %v445, %v446
        %v448 = vrot.slane %v447, 1
        %v449 = vadd.f32 %v447, %v448
        %v451 = vlaneseq
        %v452 = vshrl.u32 %v451, 7
        %v453 = vsub.s32 0, %v452
        %v454 = vrot.slane %v310, %v453
        %v455 = vlaneseq
        %v456 = vshrl.u32 %v455, 7
        %v457 = vsub.s32 1, %v456
        %v458 = vrot.slane %v310, %v457
        %v461 = vsub.f32 %v442, %v454
        %v462 = vsub.f32 %v449, %v458
        %v463 = vmul.f32 %v461, 500.0
        %v464 = vmul.f32 %v462, 500.0
        %v465 = vtanh.pop %v463
        %v466 = vtanh.pop %v464
        %v467 = vadd.f32 %v465, 1.0
        %v468 = vadd.f32 %v466, 1.0
        %v469 = vmul.f32 %v467, 0.5
        %v470 = vmul.f32 %v468, 0.5
        %v471 = vadd.f32 %v469, 0.0
        %v472 = vadd.f32 %v470, 0.0
        %vm473 = vcmp.gt.s32.totalorder %v308, 0
        %v474 = vsel %vm473, %v308, 0
        %vm475 = vcmp.lt.s32.totalorder %v474, 15
        %v476 = vsel %vm475, %v474, 15
        %v477 = vlaneseq
        %v478 = vshrl.u32 %v477, 7
        %v479 = vsub.s32 0, %v478
        %v480 = vrot.slane %v476, %v479
        %v481 = vlaneseq
        %v482 = vshrl.u32 %v481, 7
        %v483 = vsub.s32 1, %v482
        %v484 = vrot.slane %v476, %v483
        %vm485 = vcmp.eq.s32.totalorder %v317, %v480
        %vm486 = vcmp.eq.s32.totalorder %v317, %v484
        %vm487 = vcmp.eq.s32.totalorder %v318, %v480
        %vm488 = vcmp.eq.s32.totalorder %v318, %v484
        %v489 = vsel %vm485, %v411, 0.0
        %v490 = vsel %vm486, %v412, 0.0
        %v491 = vsel %vm487, %v413, 0.0
        %v492 = vsel %vm488, %v414, 0.0
        %v493 = vadd.f32 %v489, %v491
        %v494 = vrot.slane %v493, 4
        %v495 = vadd.f32 %v493, %v494
        %v496 = vrot.slane %v495, 2
        %v497 = vadd.f32 %v495, %v496
        %v498 = vrot.slane %v497, 1
        %v499 = vadd.f32 %v497, %v498
        %v500 = vadd.f32 %v490, %v492
        %v501 = vrot.slane %v500, 4
        %v502 = vadd.f32 %v500, %v501
        %v503 = vrot.slane %v502, 2
        %v504 = vadd.f32 %v502, %v503
        %v505 = vrot.slane %v504, 1
        %v506 = vadd.f32 %v504, %v505
        %v507 = vsub.f32 %v499, %v454
        %v508 = vsub.f32 %v506, %v458
        %v509 = vmul.f32 %v507, 500.0
        %v510 = vmul.f32 %v508, 500.0
        %v511 = vtanh.pop %v509
        %v512 = vtanh.pop %v510
        %v513 = vadd.f32 %v511, 1.0
        %v514 = vadd.f32 %v512, 1.0
        %v515 = vmul.f32 %v513, 0.5
        %v516 = vmul.f32 %v514, 0.5
        %v517 = vadd.f32 %v471, %v515
        %v518 = vadd.f32 %v472, %v516
        %v519 = vadd.s32 %v308, 1
        %vm520 = vcmp.gt.s32.totalorder %v519, 0
        %v521 = vsel %vm520, %v519, 0
        %vm522 = vcmp.lt.s32.totalorder %v521, 15
        %v523 = vsel %vm522, %v521, 15
        %v524 = vlaneseq
        %v525 = vshrl.u32 %v524, 7
        %v526 = vsub.s32 0, %v525
        %v527 = vrot.slane %v523, %v526
        %v528 = vlaneseq
        %v529 = vshrl.u32 %v528, 7
        %v530 = vsub.s32 1, %v529
        %v531 = vrot.slane %v523, %v530
        %vm532 = vcmp.eq.s32.totalorder %v317, %v527
        %vm533 = vcmp.eq.s32.totalorder %v317, %v531
        %vm534 = vcmp.eq.s32.totalorder %v318, %v527
        %vm535 = vcmp.eq.s32.totalorder %v318, %v531
        %v536 = vsel %vm532, %v411, 0.0
        %v537 = vsel %vm533, %v412, 0.0
        %v538 = vsel %vm534, %v413, 0.0
        %v539 = vsel %vm535, %v414, 0.0
        %v540 = vadd.f32 %v536, %v538
        %v541 = vrot.slane %v540, 4
        %v542 = vadd.f32 %v540, %v541
        %v543 = vrot.slane %v542, 2
        %v544 = vadd.f32 %v542, %v543
        %v545 = vrot.slane %v544, 1
        %v546 = vadd.f32 %v544, %v545
        %v547 = vadd.f32 %v537, %v539
        %v548 = vrot.slane %v547, 4
        %v549 = vadd.f32 %v547, %v548
        %v550 = vrot.slane %v549, 2
        %v551 = vadd.f32 %v549, %v550
        %v552 = vrot.slane %v551, 1
        %v553 = vadd.f32 %v551, %v552
        %v554 = vsub.f32 %v546, %v454
        %v555 = vsub.f32 %v553, %v458
        %v556 = vmul.f32 %v554, 500.0
        %v557 = vmul.f32 %v555, 500.0
        %v558 = vtanh.pop %v556
        %v559 = vtanh.pop %v557
        %v560 = vadd.f32 %v558, 1.0
        %v561 = vadd.f32 %v559, 1.0
        %v562 = vmul.f32 %v560, 0.5
        %v563 = vmul.f32 %v561, 0.5
        %v564 = vadd.f32 %v517, %v562
        %v565 = vadd.f32 %v518, %v563
        %vm566 = vcmp.gt.s32.totalorder %v309, 0
        %v567 = vsel %vm566, %v309, 0
        %vm568 = vcmp.lt.s32.totalorder %v567, 15
        %v569 = vsel %vm568, %v567, 15
        %v570 = vlaneseq
        %v571 = vshrl.u32 %v570, 7
        %v572 = vsub.s32 0, %v571
        %v573 = vrot.slane %v569, %v572
        %v574 = vlaneseq
        %v575 = vshrl.u32 %v574, 7
        %v576 = vsub.s32 1, %v575
        %v577 = vrot.slane %v569, %v576
        %vm578 = vcmp.eq.s32.totalorder %v317, %v573
        %vm579 = vcmp.eq.s32.totalorder %v317, %v577
        %vm580 = vcmp.eq.s32.totalorder %v318, %v573
        %vm581 = vcmp.eq.s32.totalorder %v318, %v577
        %v582 = vsel %vm578, 1, 0
        %v583 = vsel %vm579, 1, 0
        %v584 = vsel %vm580, 1, 0
        %v585 = vsel %vm581, 1, 0
        %v586 = vcvt.s32.f32 %v582
        %v587 = vcvt.s32.f32 %v583
        %v588 = vcvt.s32.f32 %v584
        %v589 = vcvt.s32.f32 %v585
        %v590 = vpack.c.bf16 %v588, %v586
        %v591 = vpack.c.bf16 %v589, %v587
        %592 = vmatprep.subr.bf16.mxu0 0
        %593 = vmatpush1.bf16.msra.mxu0 0
        %594 = vmatprep.subr.bf16.mxu0 0
        %595 = vmatpush1.bf16.msra.mxu0 0
        %596 = vmatprep.subr.bf16.mxu0 0
        %597 = vmatpush1.bf16.msra.mxu0 0
        %598 = vmatprep.subr.bf16.mxu0 0
        %599 = vmatpush1.bf16.msra.mxu0 0
        %600 = vmatprep.subr.bf16.mxu0 0
        %601 = vmatpush1.bf16.msra.mxu0 0
        %602 = vmatprep.subr.bf16.mxu0 0
        %603 = vmatpush1.bf16.msra.mxu0 0
        %604 = vmatprep.subr.bf16.mxu0 0
        %605 = vmatpush1.bf16.msra.mxu0 0
        %606 = vmatprep.subr.bf16.mxu0 %v591
        %607 = vmatpush1.bf16.msra.mxu0 %v590
        %608 = vmatprep.subr.bf16.mxu0 0
        %609 = vmatpush2.bf16.msra.mxu0 0
        %610 = vmatprep.subr.bf16.mxu0 0
        %611 = vmatpush2.bf16.msra.mxu0 0
        %612 = vmatprep.subr.bf16.mxu0 0
        %613 = vmatpush2.bf16.msra.mxu0 0
        %614 = vmatprep.subr.bf16.mxu0 0
        %615 = vmatpush2.bf16.msra.mxu0 0
        %616 = vmatprep.subr.bf16.mxu0 0
        %617 = vmatpush2.bf16.msra.mxu0 0
        %618 = vmatprep.subr.bf16.mxu0 0
        %619 = vmatpush2.bf16.msra.mxu0 0
        %620 = vmatprep.subr.bf16.mxu0 0
        %621 = vmatpush2.bf16.msra.mxu0 0
        %622 = vmatprep.subr.bf16.mxu0 0
        %623 = vmatpush2.bf16.msra.mxu0 0
        %624 = vmatprep.mubr.bf16.mxu0 0
        %625 = vmatmul.mubr.bf16.gmra.mxu0 %v353
        %v626 = vpop.f32.mrf.mxu0
        %v627 = vadd.f32 0.0, %v626
        %v628 = vpop.f32.mrf.mxu0
        %v629 = vadd.f32 0.0, %v628
        %v630 = vpop.f32.mrf.mxu0
        %v631 = vadd.f32 0.0, %v630
        %v632 = vpop.f32.mrf.mxu0
        %v633 = vadd.f32 0.0, %v632
        %634 = vmatprep.mubr.bf16.mxu0 0
        %635 = vmatmul.mubr.bf16.gmra.mxu0 %v356
        %v636 = vpop.f32.mrf.mxu0
        %v637 = vadd.f32 0.0, %v636
        %v638 = vpop.f32.mrf.mxu0
        %v639 = vadd.f32 0.0, %v638
        %v640 = vpop.f32.mrf.mxu0
        %v641 = vadd.f32 0.0, %v640
        %v642 = vpop.f32.mrf.mxu0
        %v643 = vadd.f32 0.0, %v642
        %644 = vdwg.mxu0
        %v645 = vadd.f32 %v627, %v637
        %v646 = vadd.f32 %v629, %v639
        %v647 = vadd.f32 %v631, %v641
        %v648 = vadd.f32 %v633, %v643
        %v649 = vsel %vm428, %v645, 0.0
        %v650 = vsel %vm429, %v646, 0.0
        %v651 = vsel %vm430, %v647, 0.0
        %v652 = vsel %vm431, %v648, 0.0
        %v653 = vadd.f32 %v649, %v651
        %v654 = vrot.slane %v653, 4
        %v655 = vadd.f32 %v653, %v654
        %v656 = vrot.slane %v655, 2
        %v657 = vadd.f32 %v655, %v656
        %v658 = vrot.slane %v657, 1
        %v659 = vadd.f32 %v657, %v658
        %v660 = vadd.f32 %v650, %v652
        %v661 = vrot.slane %v660, 4
        %v662 = vadd.f32 %v660, %v661
        %v663 = vrot.slane %v662, 2
        %v664 = vadd.f32 %v662, %v663
        %v665 = vrot.slane %v664, 1
        %v666 = vadd.f32 %v664, %v665
        %v667 = vsub.f32 %v659, %v454
        %v668 = vsub.f32 %v666, %v458
        %v669 = vmul.f32 %v667, 500.0
        %v670 = vmul.f32 %v668, 500.0
        %v671 = vtanh.pop %v669
        %v672 = vtanh.pop %v670
        %v673 = vadd.f32 %v671, 1.0
        %v674 = vadd.f32 %v672, 1.0
        %v675 = vmul.f32 %v673, 0.5
        %v676 = vmul.f32 %v674, 0.5
        %v677 = vadd.f32 %v564, %v675
        %v678 = vadd.f32 %v565, %v676
        %v679 = vsel %vm485, %v645, 0.0
        %v680 = vsel %vm486, %v646, 0.0
        %v681 = vsel %vm487, %v647, 0.0
        %v682 = vsel %vm488, %v648, 0.0
        %v683 = vadd.f32 %v679, %v681
        %v684 = vrot.slane %v683, 4
        %v685 = vadd.f32 %v683, %v684
        %v686 = vrot.slane %v685, 2
        %v687 = vadd.f32 %v685, %v686
        %v688 = vrot.slane %v687, 1
        %v689 = vadd.f32 %v687, %v688
        %v690 = vadd.f32 %v680, %v682
        %v691 = vrot.slane %v690, 4
        %v692 = vadd.f32 %v690, %v691
        %v693 = vrot.slane %v692, 2
        %v694 = vadd.f32 %v692, %v693
        %v695 = vrot.slane %v694, 1
        %v696 = vadd.f32 %v694, %v695
        %v697 = vsub.f32 %v689, %v454
        %v698 = vsub.f32 %v696, %v458
        %v699 = vmul.f32 %v697, 500.0
        %v700 = vmul.f32 %v698, 500.0
        %v701 = vtanh.pop %v699
        %v702 = vtanh.pop %v700
        %v703 = vadd.f32 %v701, 1.0
        %v704 = vadd.f32 %v702, 1.0
        %v705 = vmul.f32 %v703, 0.5
        %v706 = vmul.f32 %v704, 0.5
        %v707 = vadd.f32 %v677, %v705
        %v708 = vadd.f32 %v678, %v706
        %v709 = vsel %vm532, %v645, 0.0
        %v710 = vsel %vm533, %v646, 0.0
        %v711 = vsel %vm534, %v647, 0.0
        %v712 = vsel %vm535, %v648, 0.0
        %v713 = vadd.f32 %v709, %v711
        %v714 = vrot.slane %v713, 4
        %v715 = vadd.f32 %v713, %v714
        %v716 = vrot.slane %v715, 2
        %v717 = vadd.f32 %v715, %v716
        %v718 = vrot.slane %v717, 1
        %v719 = vadd.f32 %v717, %v718
        %v720 = vadd.f32 %v710, %v712
        %v721 = vrot.slane %v720, 4
        %v722 = vadd.f32 %v720, %v721
        %v723 = vrot.slane %v722, 2
        %v724 = vadd.f32 %v722, %v723
        %v725 = vrot.slane %v724, 1
        %v726 = vadd.f32 %v724, %v725
        %v727 = vsub.f32 %v719, %v454
        %v728 = vsub.f32 %v726, %v458
        %v729 = vmul.f32 %v727, 500.0
        %v730 = vmul.f32 %v728, 500.0
        %v731 = vtanh.pop %v729
        %v732 = vtanh.pop %v730
        %v733 = vadd.f32 %v731, 1.0
        %v734 = vadd.f32 %v732, 1.0
        %v735 = vmul.f32 %v733, 0.5
        %v736 = vmul.f32 %v734, 0.5
        %v737 = vadd.f32 %v707, %v735
        %v738 = vadd.f32 %v708, %v736
        %v739 = vadd.s32 %v309, 1
        %vm740 = vcmp.gt.s32.totalorder %v739, 0
        %v741 = vsel %vm740, %v739, 0
        %vm742 = vcmp.lt.s32.totalorder %v741, 15
        %v743 = vsel %vm742, %v741, 15
        %v744 = vlaneseq
        %v745 = vshrl.u32 %v744, 7
        %v746 = vsub.s32 0, %v745
        %v747 = vrot.slane %v743, %v746
        %v748 = vlaneseq
        %v749 = vshrl.u32 %v748, 7
        %v750 = vsub.s32 1, %v749
        %v751 = vrot.slane %v743, %v750
        %vm752 = vcmp.eq.s32.totalorder %v317, %v747
        %vm753 = vcmp.eq.s32.totalorder %v317, %v751
        %vm754 = vcmp.eq.s32.totalorder %v318, %v747
        %vm755 = vcmp.eq.s32.totalorder %v318, %v751
        %v756 = vsel %vm752, 1, 0
        %v757 = vsel %vm753, 1, 0
        %v758 = vsel %vm754, 1, 0
        %v759 = vsel %vm755, 1, 0
        %v760 = vcvt.s32.f32 %v756
        %v761 = vcvt.s32.f32 %v757
        %v762 = vcvt.s32.f32 %v758
        %v763 = vcvt.s32.f32 %v759
        %v764 = vpack.c.bf16 %v762, %v760
        %v765 = vpack.c.bf16 %v763, %v761
        %766 = vmatprep.subr.bf16.mxu0 0
        %767 = vmatpush1.bf16.msra.mxu0 0
        %768 = vmatprep.subr.bf16.mxu0 0
        %769 = vmatpush1.bf16.msra.mxu0 0
        %770 = vmatprep.subr.bf16.mxu0 0
        %771 = vmatpush1.bf16.msra.mxu0 0
        %772 = vmatprep.subr.bf16.mxu0 0
        %773 = vmatpush1.bf16.msra.mxu0 0
        %774 = vmatprep.subr.bf16.mxu0 0
        %775 = vmatpush1.bf16.msra.mxu0 0
        %776 = vmatprep.subr.bf16.mxu0 0
        %777 = vmatpush1.bf16.msra.mxu0 0
        %778 = vmatprep.subr.bf16.mxu0 0
        %779 = vmatpush1.bf16.msra.mxu0 0
        %780 = vmatprep.subr.bf16.mxu0 %v765
        %781 = vmatpush1.bf16.msra.mxu0 %v764
        %782 = vmatprep.subr.bf16.mxu0 0
        %783 = vmatpush2.bf16.msra.mxu0 0
        %784 = vmatprep.subr.bf16.mxu0 0
        %785 = vmatpush2.bf16.msra.mxu0 0
        %786 = vmatprep.subr.bf16.mxu0 0
        %787 = vmatpush2.bf16.msra.mxu0 0
        %788 = vmatprep.subr.bf16.mxu0 0
        %789 = vmatpush2.bf16.msra.mxu0 0
        %790 = vmatprep.subr.bf16.mxu0 0
        %791 = vmatpush2.bf16.msra.mxu0 0
        %792 = vmatprep.subr.bf16.mxu0 0
        %793 = vmatpush2.bf16.msra.mxu0 0
        %794 = vmatprep.subr.bf16.mxu0 0
        %795 = vmatpush2.bf16.msra.mxu0 0
        %796 = vmatprep.subr.bf16.mxu0 0
        %797 = vmatpush2.bf16.msra.mxu0 0
        %798 = vmatprep.mubr.bf16.mxu0 0
        %799 = vmatmul.mubr.bf16.gmra.mxu0 %v353
        %v800 = vpop.f32.mrf.mxu0
        %v801 = vadd.f32 0.0, %v800
        %v802 = vpop.f32.mrf.mxu0
        %v803 = vadd.f32 0.0, %v802
        %v804 = vpop.f32.mrf.mxu0
        %v805 = vadd.f32 0.0, %v804
        %v806 = vpop.f32.mrf.mxu0
        %v807 = vadd.f32 0.0, %v806
        %808 = vmatprep.mubr.bf16.mxu0 0
        %809 = vmatmul.mubr.bf16.gmra.mxu0 %v356
        %v810 = vpop.f32.mrf.mxu0
        %v811 = vadd.f32 0.0, %v810
        %v812 = vpop.f32.mrf.mxu0
        %v813 = vadd.f32 0.0, %v812
        %v814 = vpop.f32.mrf.mxu0
        %v815 = vadd.f32 0.0, %v814
        %v816 = vpop.f32.mrf.mxu0
        %v817 = vadd.f32 0.0, %v816
        %818 = vdwg.mxu0
        %v819 = vadd.f32 %v801, %v811
        %v820 = vadd.f32 %v803, %v813
        %v821 = vadd.f32 %v805, %v815
        %v822 = vadd.f32 %v807, %v817
        %v823 = vsel %vm428, %v819, 0.0
        %v824 = vsel %vm429, %v820, 0.0
        %v825 = vsel %vm430, %v821, 0.0
        %v826 = vsel %vm431, %v822, 0.0
        %v827 = vadd.f32 %v823, %v825
        %v828 = vrot.slane %v827, 4
        %v829 = vadd.f32 %v827, %v828
        %v830 = vrot.slane %v829, 2
        %v831 = vadd.f32 %v829, %v830
        %v832 = vrot.slane %v831, 1
        %v833 = vadd.f32 %v831, %v832
        %v834 = vadd.f32 %v824, %v826
        %v835 = vrot.slane %v834, 4
        %v836 = vadd.f32 %v834, %v835
        %v837 = vrot.slane %v836, 2
        %v838 = vadd.f32 %v836, %v837
        %v839 = vrot.slane %v838, 1
        %v840 = vadd.f32 %v838, %v839
        %v841 = vsub.f32 %v833, %v454
        %v842 = vsub.f32 %v840, %v458
        %v843 = vmul.f32 %v841, 500.0
        %v844 = vmul.f32 %v842, 500.0
        %v845 = vtanh.pop %v843
        %v846 = vtanh.pop %v844
        %v847 = vadd.f32 %v845, 1.0
        %v848 = vadd.f32 %v846, 1.0
        %v849 = vmul.f32 %v847, 0.5
        %v850 = vmul.f32 %v848, 0.5
        %v851 = vadd.f32 %v737, %v849
        %v852 = vadd.f32 %v738, %v850
        %v853 = vsel %vm485, %v819, 0.0
        %v854 = vsel %vm486, %v820, 0.0
        %v855 = vsel %vm487, %v821, 0.0
        %v856 = vsel %vm488, %v822, 0.0
        %v857 = vadd.f32 %v853, %v855
        %v858 = vrot.slane %v857, 4
        %v859 = vadd.f32 %v857, %v858
        %v860 = vrot.slane %v859, 2
        %v861 = vadd.f32 %v859, %v860
        %v862 = vrot.slane %v861, 1
        %v863 = vadd.f32 %v861, %v862
        %v864 = vadd.f32 %v854, %v856
        %v865 = vrot.slane %v864, 4
        %v866 = vadd.f32 %v864, %v865
        %v867 = vrot.slane %v866, 2
        %v868 = vadd.f32 %v866, %v867
        %v869 = vrot.slane %v868, 1
        %v870 = vadd.f32 %v868, %v869
        %v871 = vsub.f32 %v863, %v454
        %v872 = vsub.f32 %v870, %v458
        %v873 = vmul.f32 %v871, 500.0
        %v874 = vmul.f32 %v872, 500.0
        %v875 = vtanh.pop %v873
        %v876 = vtanh.pop %v874
        %v877 = vadd.f32 %v875, 1.0
        %v878 = vadd.f32 %v876, 1.0
        %v879 = vmul.f32 %v877, 0.5
        %v880 = vmul.f32 %v878, 0.5
        %v881 = vadd.f32 %v851, %v879
        %v882 = vadd.f32 %v852, %v880
        %v883 = vsel %vm532, %v819, 0.0
        %v884 = vsel %vm533, %v820, 0.0
        %v885 = vsel %vm534, %v821, 0.0
        %v886 = vsel %vm535, %v822, 0.0
        %v887 = vadd.f32 %v883, %v885
        %v888 = vrot.slane %v887, 4
        %v889 = vadd.f32 %v887, %v888
        %v890 = vrot.slane %v889, 2
        %v891 = vadd.f32 %v889, %v890
        %v892 = vrot.slane %v891, 1
        %v893 = vadd.f32 %v891, %v892
        %v894 = vadd.f32 %v884, %v886
        %v895 = vrot.slane %v894, 4
        %v896 = vadd.f32 %v894, %v895
        %v897 = vrot.slane %v896, 2
        %v898 = vadd.f32 %v896, %v897
        %v899 = vrot.slane %v898, 1
        %v900 = vadd.f32 %v898, %v899
        %v901 = vsub.f32 %v893, %v454
        %v902 = vsub.f32 %v900, %v458
        %v903 = vmul.f32 %v901, 500.0
        %v904 = vmul.f32 %v902, 500.0
        %v905 = vtanh.pop %v903
        %v906 = vtanh.pop %v904
        %v907 = vadd.f32 %v905, 1.0
        %v908 = vadd.f32 %v906, 1.0
        %v909 = vmul.f32 %v907, 0.5
        %v910 = vmul.f32 %v908, 0.5
        %v911 = vadd.f32 %v881, %v909
        %v912 = vadd.f32 %v882, %v910
        %v913 = vmul.f32 %v911, 0.11111111
        %v914 = vmul.f32 %v912, 0.11111111
        %v917 = vcombine.low %v913, %v914
        %v919 = vunpack.c.l.s4 1966171168
        %v920 = vunpack.c.0.s8 %v919
        %v921 = vlaneseq
        %v922 = vshrl.u32 %v921, 7
        %v923 = vsub.s32 %v920, %v922
        %v924 = vrot.slane %v917, %v923
        %v926 = vunpack.c.l.s4 1966171168
        %v927 = vunpack.c.0.s8 %v926
        %v928 = vlaneseq
        %v929 = vshrl.u32 %v928, 7
        %v930 = vsub.s32 %v927, %v929
        %v931 = vrot.slane %v924, %v930
        %v933 = vlaneseq
        %vm934 = vcmp.ge.s32.totalorder %v933, 0
        %vm935 = vcmp.lt.s32.totalorder %v933, 256
        %vm936 = vmand %vm934, %vm935
        %937 = vst.msk [vmem:[%s273] sm:$0x3] %vm936, %v931
        %s938 = sand.u32 %s150, 1
        %s939 = scalar_lea.sflag [#allocation3], %s938
        %s940 = sand.u32 %s150, 1
        %s941 = smul.addr %s940, 2
        %s942 = scalar_lea.vmem [#allocation2], %s941
        // Predicated region
        $region37: #{tpu_custom_call.1} parent=35 // pred_check
          %p943 = pneg %p160
        $region38: #{tpu_custom_call.1} parent=35 // pred_check_branch
          %945 = sbr.rel (%p943) target = $region40
        $region39: #{tpu_custom_call.1} parent=35 // pred_region
          %s947 = ssub.s32 32, 32
          %948 = vsyncadd %s939, %s947
          %s949 = smul.addr %s23, 2
          %s950 = smul.addr %s22, 2
          %s951 = sadd.s32 %s949, %s950
          %s952 = smul.addr %s951, 16
          %s953 = scalar_lea.hbm %s4, %s952
          %s955 = sshll.u32 %s942, 4
          %s956 = int_to_ptr.vmem [resolvable:$true] %s955
          %958 = dma.vmem_to_hbm [thread:$0]  %s956, 32, %s953, %s939
        $region40: #{tpu_custom_call.1} parent=35 // pred_fallthru
          _
      $region36: #{tpu_custom_call.1} parent=5 // pred_fallthru
        _
      %p959 = scmp.le.s32.totalorder 2, %s13
      // Predicated region
      $region41: #{tpu_custom_call.1} parent=5 // pred_check
        %p960 = pneg %p959
      $region42: #{tpu_custom_call.1} parent=5 // pred_check_branch
        %962 = sbr.rel (%p960) target = $region44
      $region43: #{tpu_custom_call.1} parent=5 // pred_region
        %s963 = ssub.s32 %s13, 2
        // Predicated region
        $region45: #{tpu_custom_call.1} parent=43 // pred_check
          %p964 = pneg %p166
        $region46: #{tpu_custom_call.1} parent=43 // pred_check_branch
          %966 = sbr.rel (%p964) target = $region48
        $region47: #{tpu_custom_call.1} parent=43 // pred_region
          %s967 = sand.u32 %s151, 1
          %s968 = scalar_lea.sflag [#allocation3], %s967
          %s969 = sand.u32 %s151, 1
          %s970 = smul.addr %s969, 2
          %s971 = scalar_lea.vmem [#allocation2], %s970
          %972 = dma.done %s968, 32
        $region48: #{tpu_custom_call.1} parent=43 // pred_fallthru
          _
      $region44: #{tpu_custom_call.1} parent=5 // pred_fallthru
        _
    $region6: #{tpu_custom_call.1} parent=1 // loop_footer
      %s17 = sadd.s32 1, %s13
    $region7: #{tpu_custom_call.1} parent=1 // loop_footer_branch
      %12 = sbr.rel target = $region3
    $region8: #{tpu_custom_call.1} parent=1 // loop_exit
      _
    %973 = vsyncpa [#allocation3], 1
    %s974 = scalar_lea.sflag [#allocation3], 1
    %975 = vsyncpa %s974, 1

</llo_original>
